<compile_context>
chip_gen: v5e
topology: v5e:2x2
jax: 0.10.0
libtpu: 0.0.40
codegen_flags: <defaults>
</compile_context>

<pallas_src>
import jax
import jax.numpy as jnp
from jax.experimental import pallas as pl
from jax.experimental.pallas import tpu as pltpu


LN_EPS = 1e-5  # nn.LayerNorm default


def _round_up(a, m):
    return ((a + m - 1) // m) * m


def _patch_embed_kernel(x_ref, w_ref, b_ref, g_ref, beta_ref, o_ref):
    # x_ref: (TN, K)  token tile, bf16   (K = C*P*P)
    # w_ref: (K, D)   projection weight, bf16 (Conv2d weight reshaped/transposed)
    # b_ref, g_ref, beta_ref: (1, D) f32  conv bias, LN gamma, LN beta
    # o_ref: (TN, D)  output tile (bf16)
    y = jnp.dot(x_ref[...], w_ref[...], preferred_element_type=jnp.float32)
    y = y + b_ref[...]

    # LayerNorm over embed_dim in f32 (biased variance, eps=1e-5 like PyTorch).
    mean = jnp.mean(y, axis=-1, keepdims=True)
    var = jnp.mean((y - mean) ** 2, axis=-1, keepdims=True)
    y_n = (y - mean) * jax.lax.rsqrt(var + LN_EPS)
    o_ref[...] = (y_n * g_ref[...] + beta_ref[...]).astype(o_ref.dtype)


def patch_embed_forward(x, proj_w, proj_b, ln_g, ln_b, patch_size, *,
                        token_tile=256, out_dtype=jnp.bfloat16):
    """x: [B, C, H, W] (NCHW).  Returns (tokens [B, N, D], (H//P, W//P))."""
    B, C, H, W = x.shape
    P = patch_size
    assert H % P == 0 and W % P == 0
    Hp, Wp = H // P, W // P
    D = proj_w.shape[0]
    K = C * P * P
    N = B * Hp * Wp

    # Patchify (glue, plain JAX): [B,C,H,W] -> [N, C*P*P] in (c, kh, kw) order.
    # Materialized once, in bf16, so the transpose pass moves half the bytes of
    # an f32 materialization.
    xp = x.astype(jnp.bfloat16).reshape(B, C, Hp, P, Wp, P)
    xp = xp.transpose(0, 2, 4, 1, 3, 5)                 # [B, Hp, Wp, C, P, P]
    tokens = xp.reshape(N, K)

    # Conv2d weight [D, C, P, P] -> matmul weight [K, D] (bf16 for the MXU).
    w_mat = proj_w.reshape(D, K).T.astype(jnp.bfloat16)
    b_row = proj_b.reshape(1, D).astype(jnp.float32)
    g_row = ln_g.reshape(1, D).astype(jnp.float32)
    beta_row = ln_b.reshape(1, D).astype(jnp.float32)

    # Token tile: default 256 rows (multiple of 128 for the v5e MXU, multiple
    # of 16 for bf16 sublane packing); clamp for tiny inputs, pad ragged N.
    TN = max(16, min(token_tile, _round_up(N, 16)))
    TN = _round_up(TN, 16)
    N_pad = _round_up(N, TN)
    if N_pad != N:
        # Zero rows are harmless through matmul+LN and are sliced off below;
        # XLA fuses this pad with the patchify copy above.
        tokens = jnp.pad(tokens, ((0, N_pad - N), (0, 0)))

    # Explicit scoped-VMEM budget derived from the tile footprint (inputs are
    # double-buffered by the pipeline).  Keeps the same tiling valid on
    # v5e/v6e/v7x without relying on per-chip defaults.
    out_bytes = jnp.dtype(out_dtype).itemsize
    vmem_est = (2 * TN * K * 2          # token tile, bf16, double-buffered
                + 2 * K * D * 2         # weight, bf16 (constant, still 2 bufs)
                + 2 * 3 * D * 4         # bias / gamma / beta, f32
                + 2 * TN * D * out_bytes)
    vmem_limit = int(min(max(2 * vmem_est, 32 * 1024 * 1024),
                         64 * 1024 * 1024))

    out = pl.pallas_call(
        _patch_embed_kernel,
        out_shape=jax.ShapeDtypeStruct((N_pad, D), out_dtype),
        grid_spec=pltpu.PrefetchScalarGridSpec(
            num_scalar_prefetch=0,
            grid=(N_pad // TN,),
            in_specs=[
                pl.BlockSpec((TN, K), lambda i: (i, 0)),
                pl.BlockSpec((K, D), lambda i: (0, 0)),
                pl.BlockSpec((1, D), lambda i: (0, 0)),
                pl.BlockSpec((1, D), lambda i: (0, 0)),
                pl.BlockSpec((1, D), lambda i: (0, 0)),
            ],
            out_specs=pl.BlockSpec((TN, D), lambda i: (i, 0)),
        ),
        compiler_params=pltpu.CompilerParams(
            dimension_semantics=("parallel",),
            vmem_limit_bytes=vmem_limit),
    )(tokens, w_mat, b_row, g_row, beta_row)

    if N_pad != N:
        out = out[:N]
    return out.reshape(B, Hp * Wp, D), (Hp, Wp)


def _reference(x, proj_w, proj_b, ln_g, ln_b, patch_size):
    # Pure-JAX reference.  Inputs are quantized to bf16 exactly like the kernel
    # feeds the MXU, then the conv / LN are done in f32, so the comparison is
    # tight (only output-cast rounding differs).
    B, C, H, W = x.shape
    P = patch_size
    xq = x.astype(jnp.bfloat16).astype(jnp.float32)
    wq = proj_w.astype(jnp.bfloat16).astype(jnp.float32)
    y = jax.lax.conv_general_dilated(
        xq, wq, window_strides=(P, P), padding="VALID",
        dimension_numbers=("NCHW", "OIHW", "NCHW"))
    y = y + proj_b.astype(jnp.float32).reshape(1, -1, 1, 1)
    B_, D, Hp, Wp = y.shape
    y = y.reshape(B_, D, Hp * Wp).transpose(0, 2, 1)
    mean = jnp.mean(y, axis=-1, keepdims=True)
    var = jnp.mean((y - mean) ** 2, axis=-1, keepdims=True)
    y = (y - mean) * jax.lax.rsqrt(var + LN_EPS) * ln_g + ln_b
    return y, (Hp, Wp)


if __name__ == "__main__":
    # Small synthetic config consistent with PatchEmbed:
    # img_size=16, patch_size=4, in_chans=4, embed_dim=32, batch=2.
    B, C, IMG, P, D = 2, 4, 16, 4, 32

    key = jax.random.PRNGKey(0)
    k_x, k_w, k_b = jax.random.split(key, 3)
    x = jax.random.normal(k_x, (B, C, IMG, IMG), dtype=jnp.float32)
    proj_w = jax.random.normal(k_w, (D, C, P, P), dtype=jnp.float32) * 0.02
    proj_b = jax.random.normal(k_b, (D,), dtype=jnp.float32) * 0.02
    ln_g = jnp.ones((D,), dtype=jnp.float32)   # LayerNorm init
    ln_b = jnp.zeros((D,), dtype=jnp.float32)

    out, (Hp, Wp) = patch_embed_forward(x, proj_w, proj_b, ln_g, ln_b, P)
    out = jax.block_until_ready(out)

    ref, (Hr, Wr) = _reference(x, proj_w, proj_b, ln_g, ln_b, P)
    assert out.shape == (B, (IMG // P) * (IMG // P), D)
    assert (Hp, Wp) == (Hr, Wr) == (IMG // P, IMG // P)
    # bf16 output cast -> slightly looser tolerance than the all-f32 version.
    assert jnp.allclose(out.astype(jnp.float32), ref, atol=3e-2, rtol=3e-2)

    print("KERNEL_OK")
</pallas_src>

<mosaic_0001>
module attributes {stable_mosaic.version = 11 : i64} {
  func.func @_patch_embed_kernel(%arg0: i32, %arg1: memref<32x64xbf16, #tpu.memory_space<vmem>>, %arg2: memref<64x32xbf16, #tpu.memory_space<vmem>>, %arg3: memref<1x32xf32, #tpu.memory_space<vmem>>, %arg4: memref<1x32xf32, #tpu.memory_space<vmem>>, %arg5: memref<1x32xf32, #tpu.memory_space<vmem>>, %arg6: memref<32x32xbf16, #tpu.memory_space<vmem>>) attributes {dimension_semantics = [#tpu.dimension_semantics<parallel>], iteration_bounds = array<i64: 1>, scalar_prefetch = 0 : i64, scratch_operands = 0 : i64, tpu.core_type = #tpu.core_type<tc>, window_params = [{transform_indices = @transform_0, window_bounds = array<i64: 32, 64>}, {pipeline_mode = #tpu.pipeline_mode<synchronous>, transform_indices = @transform_1, window_bounds = array<i64: 64, 32>}, {pipeline_mode = #tpu.pipeline_mode<synchronous>, transform_indices = @transform_2, window_bounds = array<i64: 1, 32>}, {pipeline_mode = #tpu.pipeline_mode<synchronous>, transform_indices = @transform_3, window_bounds = array<i64: 1, 32>}, {pipeline_mode = #tpu.pipeline_mode<synchronous>, transform_indices = @transform_4, window_bounds = array<i64: 1, 32>}, {transform_indices = @transform_5, window_bounds = array<i64: 32, 32>}]} {
    %c0 = arith.constant 0 : index
    %c0_0 = arith.constant 0 : index
    %0 = vector.load %arg1[%c0, %c0_0] : memref<32x64xbf16, #tpu.memory_space<vmem>>, vector<32x64xbf16>
    %c0_1 = arith.constant 0 : index
    %c0_2 = arith.constant 0 : index
    %1 = vector.load %arg2[%c0_1, %c0_2] : memref<64x32xbf16, #tpu.memory_space<vmem>>, vector<64x32xbf16>
    %cst = arith.constant dense<0.000000e+00> : vector<32x32xf32>
    %2 = tpu.matmul %0, %1, %cst {dimension_numbers = #tpu.dot_dimension_numbers<[1], [0], [0], [1], [0, 0, 1, 1], [], []>} : vector<32x64xbf16>, vector<64x32xbf16>, vector<32x32xf32> -> vector<32x32xf32>
    %c0_3 = arith.constant 0 : index
    %c0_4 = arith.constant 0 : index
    %3 = vector.load %arg3[%c0_3, %c0_4] : memref<1x32xf32, #tpu.memory_space<vmem>>, vector<1x32xf32>
    %4 = vector.broadcast %3 : vector<1x32xf32> to vector<32x32xf32>
    %5 = arith.addf %2, %4 : vector<32x32xf32>
    %cst_5 = arith.constant dense<0.000000e+00> : vector<32xf32>
    %6 = vector.multi_reduction <add>, %5, %cst_5 [1] : vector<32x32xf32> to vector<32xf32>
    %7 = vector.shape_cast %6 : vector<32xf32> to vector<32x1xf32>
    %cst_6 = arith.constant 3.200000e+01 : f32
    %8 = vector.broadcast %cst_6 : f32 to vector<32x1xf32>
    %9 = arith.divf %7, %8 : vector<32x1xf32>
    %10 = vector.broadcast %9 : vector<32x1xf32> to vector<32x32xf32>
    %11 = arith.subf %5, %10 : vector<32x32xf32>
    %12 = arith.mulf %11, %11 : vector<32x32xf32>
    %cst_7 = arith.constant dense<0.000000e+00> : vector<32xf32>
    %13 = vector.multi_reduction <add>, %12, %cst_7 [1] : vector<32x32xf32> to vector<32xf32>
    %14 = vector.shape_cast %13 : vector<32xf32> to vector<32x1xf32>
    %cst_8 = arith.constant 3.200000e+01 : f32
    %15 = vector.broadcast %cst_8 : f32 to vector<32x1xf32>
    %16 = arith.divf %14, %15 : vector<32x1xf32>
    %17 = vector.broadcast %9 : vector<32x1xf32> to vector<32x32xf32>
    %18 = arith.subf %5, %17 : vector<32x32xf32>
    %cst_9 = arith.constant 9.99999974E-6 : f32
    %19 = vector.broadcast %cst_9 : f32 to vector<32x1xf32>
    %20 = arith.addf %16, %19 : vector<32x1xf32>
    %21 = math.rsqrt %20 : vector<32x1xf32>
    %22 = vector.broadcast %21 : vector<32x1xf32> to vector<32x32xf32>
    %23 = arith.mulf %18, %22 : vector<32x32xf32>
    %c0_10 = arith.constant 0 : index
    %c0_11 = arith.constant 0 : index
    %24 = vector.load %arg4[%c0_10, %c0_11] : memref<1x32xf32, #tpu.memory_space<vmem>>, vector<1x32xf32>
    %25 = vector.broadcast %24 : vector<1x32xf32> to vector<32x32xf32>
    %26 = arith.mulf %23, %25 : vector<32x32xf32>
    %c0_12 = arith.constant 0 : index
    %c0_13 = arith.constant 0 : index
    %27 = vector.load %arg5[%c0_12, %c0_13] : memref<1x32xf32, #tpu.memory_space<vmem>>, vector<1x32xf32>
    %28 = vector.broadcast %27 : vector<1x32xf32> to vector<32x32xf32>
    %29 = arith.addf %26, %28 : vector<32x32xf32>
    %30 = arith.truncf %29 : vector<32x32xf32> to vector<32x32xbf16>
    %c0_14 = arith.constant 0 : index
    %c0_15 = arith.constant 0 : index
    %31 = vector.load %arg6[%c0_14, %c0_15] : memref<32x32xbf16, #tpu.memory_space<vmem>>, vector<32x32xbf16>
    tpu.vector_store %arg6[%c0_14, %c0_15], %30 {strides = array<i32>} : memref<32x32xbf16, #tpu.memory_space<vmem>>, vector<32x32xbf16>,
    return
  }
  func.func @transform_0(%arg0: i32) -> (i32, i32) {
    %c0_i32 = arith.constant 0 : i32
    %c0_i32_0 = arith.constant 0 : i32
    return %arg0, %c0_i32 : i32, i32
  }
  func.func @transform_1(%arg0: i32) -> (i32, i32) {
    %c0_i32 = arith.constant 0 : i32
    %c0_i32_0 = arith.constant 0 : i32
    %c0_i32_1 = arith.constant 0 : i32
    return %c0_i32, %c0_i32_0 : i32, i32
  }
  func.func @transform_2(%arg0: i32) -> (i32, i32) {
    %c0_i32 = arith.constant 0 : i32
    %c0_i32_0 = arith.constant 0 : i32
    %c0_i32_1 = arith.constant 0 : i32
    return %c0_i32, %c0_i32_0 : i32, i32
  }
  func.func @transform_3(%arg0: i32) -> (i32, i32) {
    %c0_i32 = arith.constant 0 : i32
    %c0_i32_0 = arith.constant 0 : i32
    %c0_i32_1 = arith.constant 0 : i32
    return %c0_i32, %c0_i32_0 : i32, i32
  }
  func.func @transform_4(%arg0: i32) -> (i32, i32) {
    %c0_i32 = arith.constant 0 : i32
    %c0_i32_0 = arith.constant 0 : i32
    %c0_i32_1 = arith.constant 0 : i32
    return %c0_i32, %c0_i32_0 : i32, i32
  }
  func.func @transform_5(%arg0: i32) -> (i32, i32) {
    %c0_i32 = arith.constant 0 : i32
    %c0_i32_0 = arith.constant 0 : i32
    return %arg0, %c0_i32 : i32, i32
  }
}

</mosaic_0001>

<llo_original>
// kernel: tpu_custom_call.1
$region0: #{tpu_custom_call.1}
  #allocation0 [shape = 'u32[]', space=smem, size = 0x4, offset = 0x4, fixed_abs, tag = 'smem constant byte address 0x4 - core index']
  #allocation1 [shape = 'u32[72,128]{1,0:T(1,128)}', space=vmem, size = 0x9000, scoped, tag = 'internal scratch']
  %s0 = inlined_call_operand.vmem [shape: bf16[32,64], index: 0, kind: input, shape index: {}]
  %s1 = inlined_call_operand.vmem [shape: bf16[64,32], index: 1, kind: input, shape index: {}]
  %s2 = inlined_call_operand.vmem [shape: f32[1,32], index: 2, kind: input, shape index: {}]
  %s3 = inlined_call_operand.vmem [shape: f32[1,32], index: 3, kind: input, shape index: {}]
  %s4 = inlined_call_operand.vmem [shape: f32[1,32], index: 4, kind: input, shape index: {}]
  %s5 = inlined_call_operand.hbm [shape: bf16[32,32], index: 5, kind: output, shape index: {}]
  %s6 = sld [smem:[#allocation0]]
  $region30: #{tpu_custom_call.1} parent=0
    _
  %s8 = ssub.s32 1, %s6
  %s9 = scalar_select 0, %s8, %s6
  $region1: #{tpu_custom_call.1} parent=0
    #allocation2 [shape = 'u8[8192]{0}', space=vmem, size = 0x2000, scoped, tag = 'output window, operand 0, single buffered']
    #allocation3 [shape = 's32[1]{0}', space=sflag, size = 0x4, scoped, tag = 'scoped memory for tpu_custom_call.1']
    %10 = vsyncpa [#allocation3], 0
    // Predicated region
    $region2: #{tpu_custom_call.1} parent=1 // pred_check
      _
    $region3: #{tpu_custom_call.1} parent=1 // pred_check_branch
      %12 = sbr.rel (0) target = $region5
    $region4: #{tpu_custom_call.1} parent=1 // pred_region
      _
    $region5: #{tpu_custom_call.1} parent=1 // pred_fallthru
      _
    // Predicated region
    $region6: #{tpu_custom_call.1} parent=1 // pred_check
      _
    $region7: #{tpu_custom_call.1} parent=1 // pred_check_branch
      %14 = sbr.rel (0) target = $region9
    $region8: #{tpu_custom_call.1} parent=1 // pred_region
      _
    $region9: #{tpu_custom_call.1} parent=1 // pred_fallthru
      _
    // Predicated region
    $region10: #{tpu_custom_call.1} parent=1 // pred_check
      _
    $region11: #{tpu_custom_call.1} parent=1 // pred_check_branch
      %16 = sbr.rel (0) target = $region13
    $region12: #{tpu_custom_call.1} parent=1 // pred_region
      _
    $region13: #{tpu_custom_call.1} parent=1 // pred_fallthru
      _
    // Predicated region
    $region14: #{tpu_custom_call.1} parent=1 // pred_check
      _
    $region15: #{tpu_custom_call.1} parent=1 // pred_check_branch
      %18 = sbr.rel (0) target = $region17
    $region16: #{tpu_custom_call.1} parent=1 // pred_region
      _
    $region17: #{tpu_custom_call.1} parent=1 // pred_fallthru
      _
    // Predicated region
    $region18: #{tpu_custom_call.1} parent=1 // pred_check
      _
    $region19: #{tpu_custom_call.1} parent=1 // pred_check_branch
      %20 = sbr.rel (0) target = $region21
    $region20: #{tpu_custom_call.1} parent=1 // pred_region
      _
    $region21: #{tpu_custom_call.1} parent=1 // pred_fallthru
      _
    %v22 = vld [vmem:[%s0] sm:$0xf]
    %v23 = vld [vmem:[%s0 + $0x4] sm:$0xf]
    %v24 = vld [vmem:[%s0 + $0x8] sm:$0xf]
    %v25 = vld [vmem:[%s0 + $0xc] sm:$0xf]
    %v26 = vld [vmem:[%s1] sm:$0xf]
    %v27 = vld [vmem:[%s1 + $0x4] sm:$0xf]
    %v28 = vld [vmem:[%s1 + $0x8] sm:$0xf]
    %v29 = vld [vmem:[%s1 + $0xc] sm:$0xf]
    %v30 = vld [vmem:[%s1 + $0x10] sm:$0xf]
    %v31 = vld [vmem:[%s1 + $0x14] sm:$0xf]
    %v32 = vld [vmem:[%s1 + $0x18] sm:$0xf]
    %v33 = vld [vmem:[%s1 + $0x1c] sm:$0xf]
    %v34 = vld [vmem:[%s2] sm:$0x1]
    %v36 = vperm.slane %v34, 0
    %v42 = vunpack.c.l.b16 %v22
    %v43 = vunpack.c.l.b16 %v23
    %v44 = vunpack.c.l.b16 %v24
    %v45 = vunpack.c.l.b16 %v25
    %v46 = vpack.c.b16 %v43, %v42
    %v47 = vpack.c.b16 %v45, %v44
    %v56 = vunpack.c.l.b16 %v26
    %v57 = vunpack.c.l.b16 %v27
    %v58 = vunpack.c.l.b16 %v28
    %v59 = vunpack.c.l.b16 %v29
    %v60 = vunpack.c.l.b16 %v30
    %v61 = vunpack.c.l.b16 %v31
    %v62 = vunpack.c.l.b16 %v32
    %v63 = vunpack.c.l.b16 %v33
    %v64 = vpack.c.b16 %v57, %v56
    %v65 = vpack.c.b16 %v59, %v58
    %v66 = vpack.c.b16 %v61, %v60
    %v67 = vpack.c.b16 %v63, %v62
    %vm72 = vcmask 523264
    %v74 = vsel %vm72, %v46, 0
    %v77 = vsel %vm72, %v47, 0
    %79 = vmatpush.bf16.msra.mxu0 0
    %80 = vmatpush.bf16.msra.mxu0 0
    %81 = vmatpush.bf16.msra.mxu0 0
    %82 = vmatpush.bf16.msra.mxu0 0
    %83 = vmatpush.bf16.msra.mxu0 %v67
    %84 = vmatpush.bf16.msra.mxu0 %v66
    %85 = vmatpush.bf16.msra.mxu0 %v65
    %86 = vmatpush.bf16.msra.mxu0 %v64
    %87 = vmatmul.bf16.gmra.mxu0 %v74
    %v88 = vpop.f32.mrf.mxu0
    %v89 = vadd.f32 %v36, %v88
    %v90 = vpop.f32.mrf.mxu0
    %v91 = vadd.f32 %v36, %v90
    %92 = vmatmul.bf16.gmra.mxu0 %v77
    %v93 = vpop.f32.mrf.mxu0
    %v94 = vadd.f32 %v36, %v93
    %v95 = vpop.f32.mrf.mxu0
    %v96 = vadd.f32 %v36, %v95
    %97 = vdwg.mxu0
    %vm98 = vcmask 261120
    %v99 = vsel %vm98, %v89, 0.0
    %100 = vadd.xlane.f32.xlu0 %v99
    %v101 = vpop.xlane.xlu0 %100
    %v102 = vsel %vm98, %v91, 0.0
    %103 = vadd.xlane.f32.xlu0 %v102
    %v104 = vpop.xlane.xlu0 %103
    %v105 = vsel %vm98, %v94, 0.0
    %106 = vadd.xlane.f32.xlu0 %v105
    %v107 = vpop.xlane.xlu0 %106
    %v108 = vsel %vm98, %v96, 0.0
    %109 = vadd.xlane.f32.xlu0 %v108
    %v110 = vpop.xlane.xlu0 %109
    %v111 = vrcp.pop 32.0
    %v112 = vmul.f32 32.0, %v111
    %v113 = vsub.f32 1.0, %v112
    %v114 = vmul.f32 %v111, %v113
    %v115 = vadd.f32 %v111, %v114
    %vm116 = vweird.f32 %v111
    %v117 = vsel %vm116, %v111, %v115
    %v118 = vmul.f32 %v101, %v117
    %v119 = vmul.f32 %v104, %v117
    %v120 = vmul.f32 %v107, %v117
    %v121 = vmul.f32 %v110, %v117
    %v122 = vsub.f32 %v89, %v118
    %v123 = vsub.f32 %v91, %v119
    %v124 = vsub.f32 %v94, %v120
    %v125 = vsub.f32 %v96, %v121
    %v126 = vmul.f32 %v122, %v122
    %v127 = vmul.f32 %v123, %v123
    %v128 = vmul.f32 %v124, %v124
    %v129 = vmul.f32 %v125, %v125
    %v130 = vsel %vm98, %v126, 0.0
    %131 = vadd.xlane.f32.xlu0 %v130
    %v132 = vpop.xlane.xlu0 %131
    %v133 = vsel %vm98, %v127, 0.0
    %134 = vadd.xlane.f32.xlu0 %v133
    %v135 = vpop.xlane.xlu0 %134
    %v136 = vsel %vm98, %v128, 0.0
    %137 = vadd.xlane.f32.xlu0 %v136
    %v138 = vpop.xlane.xlu0 %137
    %v139 = vsel %vm98, %v129, 0.0
    %140 = vadd.xlane.f32.xlu0 %v139
    %v141 = vpop.xlane.xlu0 %140
    %v142 = vmul.f32 %v132, %v117
    %v143 = vmul.f32 %v135, %v117
    %v144 = vmul.f32 %v138, %v117
    %v145 = vmul.f32 %v141, %v117
    %v146 = vadd.f32 %v142, 1e-05
    %v147 = vadd.f32 %v143, 1e-05
    %v148 = vadd.f32 %v144, 1e-05
    %v149 = vadd.f32 %v145, 1e-05
    %v150 = vrsqrt.pop %v146
    %v151 = vmul.f32 %v150, %v146
    %v152 = vmul.f32 %v151, %v150
    %v153 = vmul.f32 0.5, %v152
    %v154 = vsub.f32 1.5, %v153
    %v155 = vmul.f32 %v150, %v154
    %vm156 = vweird.f32 %v146
    %vm157 = vweird.f32 %v150
    %vm158 = vmor %vm156, %vm157
    %v159 = vsel %vm158, %v150, %v155
    %v160 = vrsqrt.pop %v147
    %v161 = vmul.f32 %v160, %v147
    %v162 = vmul.f32 %v161, %v160
    %v163 = vmul.f32 0.5, %v162
    %v164 = vsub.f32 1.5, %v163
    %v165 = vmul.f32 %v160, %v164
    %vm166 = vweird.f32 %v147
    %vm167 = vweird.f32 %v160
    %vm168 = vmor %vm166, %vm167
    %v169 = vsel %vm168, %v160, %v165
    %v170 = vrsqrt.pop %v148
    %v171 = vmul.f32 %v170, %v148
    %v172 = vmul.f32 %v171, %v170
    %v173 = vmul.f32 0.5, %v172
    %v174 = vsub.f32 1.5, %v173
    %v175 = vmul.f32 %v170, %v174
    %vm176 = vweird.f32 %v148
    %vm177 = vweird.f32 %v170
    %vm178 = vmor %vm176, %vm177
    %v179 = vsel %vm178, %v170, %v175
    %v180 = vrsqrt.pop %v149
    %v181 = vmul.f32 %v180, %v149
    %v182 = vmul.f32 %v181, %v180
    %v183 = vmul.f32 0.5, %v182
    %v184 = vsub.f32 1.5, %v183
    %v185 = vmul.f32 %v180, %v184
    %vm186 = vweird.f32 %v149
    %vm187 = vweird.f32 %v180
    %vm188 = vmor %vm186, %vm187
    %v189 = vsel %vm188, %v180, %v185
    %v190 = vmul.f32 %v122, %v159
    %v191 = vmul.f32 %v123, %v169
    %v192 = vmul.f32 %v124, %v179
    %v193 = vmul.f32 %v125, %v189
    %v194 = vld [vmem:[%s3] sm:$0x1]
    %v196 = vperm.slane %v194, 0
    %v198 = vmul.f32 %v190, %v196
    %v199 = vmul.f32 %v191, %v196
    %v200 = vmul.f32 %v192, %v196
    %v201 = vmul.f32 %v193, %v196
    %v202 = vld [vmem:[%s4] sm:$0x1]
    %v204 = vperm.slane %v202, 0
    %v206 = vadd.f32 %v198, %v204
    %v207 = vadd.f32 %v199, %v204
    %v208 = vadd.f32 %v200, %v204
    %v209 = vadd.f32 %v201, %v204
    %v210 = vpack.c.bf16 %v206, %v206
    %v211 = vpack.c.bf16 %v207, %v207
    %v212 = vpack.c.bf16 %v208, %v208
    %v213 = vpack.c.bf16 %v209, %v209
    %vm214 = vcmask 257024
    %215 = vst.msk [vmem:[#allocation2] sm:$0xf] %vm214, %v210
    %216 = vst.msk [vmem:[#allocation2 + $0x4] sm:$0xf] %vm214, %v211
    %217 = vst.msk [vmem:[#allocation2 + $0x8] sm:$0xf] %vm214, %v212
    %218 = vst.msk [vmem:[#allocation2 + $0xc] sm:$0xf] %vm214, %v213
    // Predicated region
    $region22: #{tpu_custom_call.1} parent=1 // pred_check
      _
    $region23: #{tpu_custom_call.1} parent=1 // pred_check_branch
      %220 = sbr.rel (0) target = $region25
    $region24: #{tpu_custom_call.1} parent=1 // pred_region
      %222 = vsyncadd [#allocation3], 0
      %s223 = sshll.u32 [#allocation2], 4
      %s224 = int_to_ptr.vmem [resolvable:$true] %s223
      %s225 = sshll.u32 %s5, 4
      %s226 = int_to_ptr.hbm [resolvable:$true] %s225
      %231 = dma.vmem_to_hbm [thread:$0]  %s224, 256, %s226, [#allocation3], 64, 64, 4
    $region25: #{tpu_custom_call.1} parent=1 // pred_fallthru
      _
    // Predicated region
    $region26: #{tpu_custom_call.1} parent=1 // pred_check
      _
    $region27: #{tpu_custom_call.1} parent=1 // pred_check_branch
      %233 = sbr.rel (0) target = $region29
    $region28: #{tpu_custom_call.1} parent=1 // pred_region
      %235 = dma.done [#allocation3], 256
    $region29: #{tpu_custom_call.1} parent=1 // pred_fallthru
      _
    %236 = vsyncpa [#allocation3], 1

</llo_original>
